<compile_context>
chip_gen: v6e
topology: v6e:2x2x1
jax: 0.10.0
libtpu: 0.0.40
codegen_flags: <defaults>
</compile_context>

<pallas_src>
import jax
import jax.numpy as jnp
from jax.experimental import pallas as pl
from jax.experimental.pallas import tpu as pltpu

_LANES = 1024        # lane-dense row width: 8 sublanes * 128 lanes (f32 vreg)
_SPLIT_ROWS = 128    # ~0.5 MiB of f32 rows: above this, use >= 2 grid blocks


def _chained_affine_kernel(params_ref, x_ref, o_ref):
    # params_ref: SMEM, shape (4,) = [w1, b1, w2, b2] (f32 scalars)
    # x_ref / o_ref: lane-dense VMEM tiles
    w1 = params_ref[0]
    b1 = params_ref[1]
    w2 = params_ref[2]
    b2 = params_ref[3]
    x = x_ref[...]
    o_ref[...] = ((x * w1 + b1) * w2 + b2).astype(o_ref.dtype)


def _sublane_multiple(dtype):
    return {4: 8, 2: 16, 1: 32}.get(jnp.dtype(dtype).itemsize, 8)


def _tile_config():
    """(max_tile_rows, vmem_limit_bytes) tuned per TPU generation."""
    vmem_bytes = 64 << 20
    try:
        info = pltpu.get_tpu_info()
        vmem_bytes = int(getattr(info, "vmem_capacity_bytes", vmem_bytes))
    except Exception:
        pass
    if vmem_bytes >= (128 << 20):
        # v5e / v6e: 8 MiB f32 tiles, ~32 MiB resident double-buffered.
        return 2048, 64 << 20
    # v7x (64 MiB / TC): 4 MiB tiles, ~16 MiB resident, leave headroom.
    return 1024, 32 << 20


def _run_affine(params, x2d, tm, vmem_limit_bytes, fuse_input):
    m, lanes = x2d.shape
    return pl.pallas_call(
        _chained_affine_kernel,
        out_shape=jax.ShapeDtypeStruct(x2d.shape, x2d.dtype),
        grid=(pl.cdiv(m, tm),),
        in_specs=[
            pl.BlockSpec(memory_space=pltpu.MemorySpace.SMEM),   # scalar params
            pl.BlockSpec((tm, lanes), lambda i: (i, 0)),         # tiled input
        ],
        out_specs=pl.BlockSpec((tm, lanes), lambda i: (i, 0)),   # tiled output
        compiler_params=pltpu.CompilerParams(
            dimension_semantics=("parallel",),
            vmem_limit_bytes=vmem_limit_bytes,
            allow_input_fusion=[False, True] if fuse_input else None,
        ),
    )(params, x2d)


def example_model_forward(img, w1, b1, w2, b2):
    """img: [..., 1]. Applies the two chained Linear(1,1) layers to img."""
    orig_shape = img.shape
    assert orig_shape[-1] == 1, "nn.Linear(1, 1) expects a trailing feature dim of 1"

    n = img.size
    sub = _sublane_multiple(img.dtype)
    max_tm, vmem_limit = _tile_config()

    # Scalar parameters (accepts PyTorch-shaped (1,1) weights / (1,) biases).
    params = jnp.stack(
        [jnp.asarray(p, jnp.float32).reshape(()) for p in (w1, b1, w2, b2)]
    )

    flat = img.reshape(-1)  # contiguous reshape: free metadata op

    # --- small path: one full-array block, no padding / slicing ----------------
    if n < _LANES:
        x2d = flat.reshape(1, n)
        out2d = _run_affine(params, x2d, tm=1,
                            vmem_limit_bytes=vmem_limit, fuse_input=False)
        return out2d.reshape(orig_shape)

    # --- bulk path --------------------------------------------------------------
    if n % _LANES == 0:
        # Zero-copy lane-dense slab; exactly 1 HBM read + 1 HBM write.
        m = n // _LANES
        x2d = flat.reshape(m, _LANES)
        padded = False
    else:
        # Tail exists: padded slab, but let XLA fuse the pad into the kernel's
        # input load so the padded slab never takes an extra HBM round trip.
        m = pl.cdiv(n, _LANES)
        x2d = jnp.pad(flat, (0, m * _LANES - n)).reshape(m, _LANES)
        padded = True

    if m < _SPLIT_ROWS:
        tm = m  # single block equal to full row extent (always a legal block)
    else:
        # >= 2 blocks (v7x megacore), rows rounded to the dtype sublane multiple.
        tm = min(max_tm, pl.cdiv(pl.cdiv(m, 2), sub) * sub)

    out2d = _run_affine(params, x2d, tm=tm,
                        vmem_limit_bytes=vmem_limit, fuse_input=padded)

    if not padded:
        return out2d.reshape(orig_shape)
    return out2d.reshape(-1)[:n].reshape(orig_shape)


if __name__ == "__main__":
    key = jax.random.PRNGKey(0)
    k_img, k_w1, k_b1, k_w2, k_b2 = jax.random.split(key, 5)

    # Small shape consistent with nn.Linear(1, 1): batch=2, seq=8, features=1.
    img = jax.random.normal(k_img, (2, 8, 1), dtype=jnp.float32)

    # Linear(1, 1) parameters in their native PyTorch shapes.
    w1 = jax.random.normal(k_w1, (1, 1), dtype=jnp.float32)
    b1 = jax.random.normal(k_b1, (1,), dtype=jnp.float32)
    w2 = jax.random.normal(k_w2, (1, 1), dtype=jnp.float32)
    b2 = jax.random.normal(k_b2, (1,), dtype=jnp.float32)

    out = example_model_forward(img, w1, b1, w2, b2)
    out = jax.block_until_ready(out)

    # Pure-JAX reference of the two chained Linear(1,1) layers.
    ref = (img * w1[0, 0] + b1[0]) * w2[0, 0] + b2[0]
    assert out.shape == img.shape
    assert jnp.allclose(out, ref, atol=1e-6, rtol=1e-6)

    print("KERNEL_OK")
</pallas_src>

<mosaic_0001>
module attributes {stable_mosaic.version = 11 : i64} {
  func.func @_chained_affine_kernel(%arg0: i32, %arg1: memref<4xf32, #tpu.memory_space<smem>>, %arg2: memref<1x16xf32, #tpu.memory_space<vmem>>, %arg3: memref<1x16xf32, #tpu.memory_space<vmem>>) attributes {dimension_semantics = [#tpu.dimension_semantics<parallel>], iteration_bounds = array<i64: 1>, scalar_prefetch = 0 : i64, scratch_operands = 0 : i64, tpu.core_type = #tpu.core_type<tc>, window_params = [{transform_indices = @transform_0, window_bounds = array<i64: 4>}, {transform_indices = @transform_1, window_bounds = array<i64: 1, 16>}, {transform_indices = @transform_2, window_bounds = array<i64: 1, 16>}]} {
    %c0 = arith.constant 0 : index
    %0 = memref.load %arg1[%c0] : memref<4xf32, #tpu.memory_space<smem>>
    %c1 = arith.constant 1 : index
    %1 = memref.load %arg1[%c1] : memref<4xf32, #tpu.memory_space<smem>>
    %c2 = arith.constant 2 : index
    %2 = memref.load %arg1[%c2] : memref<4xf32, #tpu.memory_space<smem>>
    %c3 = arith.constant 3 : index
    %3 = memref.load %arg1[%c3] : memref<4xf32, #tpu.memory_space<smem>>
    %c0_0 = arith.constant 0 : index
    %c0_1 = arith.constant 0 : index
    %4 = vector.load %arg2[%c0_0, %c0_1] : memref<1x16xf32, #tpu.memory_space<vmem>>, vector<1x16xf32>
    %5 = vector.broadcast %0 : f32 to vector<1x16xf32>
    %6 = arith.mulf %4, %5 : vector<1x16xf32>
    %7 = vector.broadcast %1 : f32 to vector<1x16xf32>
    %8 = arith.addf %6, %7 : vector<1x16xf32>
    %9 = vector.broadcast %2 : f32 to vector<1x16xf32>
    %10 = arith.mulf %8, %9 : vector<1x16xf32>
    %11 = vector.broadcast %3 : f32 to vector<1x16xf32>
    %12 = arith.addf %10, %11 : vector<1x16xf32>
    %c0_2 = arith.constant 0 : index
    %c0_3 = arith.constant 0 : index
    %13 = vector.load %arg3[%c0_2, %c0_3] : memref<1x16xf32, #tpu.memory_space<vmem>>, vector<1x16xf32>
    tpu.vector_store %arg3[%c0_2, %c0_3], %12 {strides = array<i32>} : memref<1x16xf32, #tpu.memory_space<vmem>>, vector<1x16xf32>,
    return
  }
  func.func @transform_0(%arg0: i32) -> i32 {
    %c0_i32 = arith.constant 0 : i32
    %c0_i32_0 = arith.constant 0 : i32
    return %c0_i32 : i32
  }
  func.func @transform_1(%arg0: i32) -> (i32, i32) {
    %c0_i32 = arith.constant 0 : i32
    %c0_i32_0 = arith.constant 0 : i32
    return %arg0, %c0_i32 : i32, i32
  }
  func.func @transform_2(%arg0: i32) -> (i32, i32) {
    %c0_i32 = arith.constant 0 : i32
    %c0_i32_0 = arith.constant 0 : i32
    return %arg0, %c0_i32 : i32, i32
  }
}

</mosaic_0001>

<llo_original>
// kernel: tpu_custom_call.1
$region0: #{tpu_custom_call.1}
  #allocation0 [shape = 'u32[]', space=smem, size = 0x4, offset = 0x4, fixed_abs, tag = 'smem constant byte address 0x4 - core index']
  #allocation1 [shape = 'u32[144,128]{1,0:T(1,128)}', space=vmem, size = 0x12000, scoped, tag = 'internal scratch']
  %s0 = inlined_call_operand.hbm [shape: f32[4], index: 0, kind: input, shape index: {}]
  %s1 = inlined_call_operand.vmem [shape: f32[1,16], index: 1, kind: input, shape index: {}]
  %s2 = inlined_call_operand.hbm [shape: f32[1,16], index: 2, kind: output, shape index: {}]
  %s3 = sld [smem:[#allocation0]]
  $region22: #{tpu_custom_call.1} parent=0
    _
  %s5 = ssub.s32 1, %s3
  %s6 = scalar_select 0, %s5, %s3
  $region1: #{tpu_custom_call.1} parent=0
    #allocation2 [shape = 'u8[512]{0}', space=smem, size = 0x200, scoped, tag = 'input window, operand 0, single buffered']
    #allocation3 [shape = 's32[1]{0}', space=sflag, size = 0x4, scoped, tag = 'scoped memory for tpu_custom_call.1']
    #allocation4 [shape = 's32[1]{0}', space=sflag, size = 0x4, scoped, tag = 'scoped memory for tpu_custom_call.1']
    #allocation5 [shape = 'u8[512]{0}', space=vmem, size = 0x400, scoped, tag = 'output window, operand 0, single buffered']
    %7 = vsyncpa [#allocation4], 0
    %8 = vsyncpa [#allocation3], 0
    // Predicated region
    $region2: #{tpu_custom_call.1} parent=1 // pred_check
      _
    $region3: #{tpu_custom_call.1} parent=1 // pred_check_branch
      %10 = sbr.rel (0) target = $region5
    $region4: #{tpu_custom_call.1} parent=1 // pred_region
      %s12 = ssub.s32 16, 16
      %13 = vsyncadd [#allocation4], %s12
      %16 = dma.hbm_to_smem %s0, 16, [#allocation2], [#allocation4]
    $region5: #{tpu_custom_call.1} parent=1 // pred_fallthru
      _
    // Predicated region
    $region6: #{tpu_custom_call.1} parent=1 // pred_check
      _
    $region7: #{tpu_custom_call.1} parent=1 // pred_check_branch
      %18 = sbr.rel (0) target = $region9
    $region8: #{tpu_custom_call.1} parent=1 // pred_region
      _
    $region9: #{tpu_custom_call.1} parent=1 // pred_fallthru
      _
    // Predicated region
    $region10: #{tpu_custom_call.1} parent=1 // pred_check
      _
    $region11: #{tpu_custom_call.1} parent=1 // pred_check_branch
      %20 = sbr.rel (0) target = $region13
    $region12: #{tpu_custom_call.1} parent=1 // pred_region
      %21 = dma.done [#allocation4], 16
    $region13: #{tpu_custom_call.1} parent=1 // pred_fallthru
      _
    %22 = sfence
    %s23 = sld [smem:[#allocation2]]
    %s24 = sld [smem:[#allocation2 + $0x1]]
    %s25 = sld [smem:[#allocation2 + $0x2]]
    %s26 = sld [smem:[#allocation2 + $0x3]]
    %v27 = vld [vmem:[%s1] sm:$0x1]
    %v28 = vstv %s23
    %v29 = vmul.f32 %v27, %v28
    %v30 = vstv %s24
    %v31 = vadd.f32 %v29, %v30
    %v32 = vstv %s25
    %v33 = vmul.f32 %v31, %v32
    %v34 = vstv %s26
    %v35 = vadd.f32 %v33, %v34
    %vm36 = vcmask 122880
    %37 = vst.msk [vmem:[#allocation5] sm:$0x1] %vm36, %v35
    // Predicated region
    $region14: #{tpu_custom_call.1} parent=1 // pred_check
      _
    $region15: #{tpu_custom_call.1} parent=1 // pred_check_branch
      %39 = sbr.rel (0) target = $region17
    $region16: #{tpu_custom_call.1} parent=1 // pred_region
      %s41 = ssub.s32 16, 16
      %42 = vsyncadd [#allocation3], %s41
      %s44 = sshll.u32 [#allocation5], 4
      %s45 = int_to_ptr.vmem [resolvable:$true] %s44
      %47 = dma.vmem_to_hbm [thread:$0]  %s45, 16, %s2, [#allocation3]
    $region17: #{tpu_custom_call.1} parent=1 // pred_fallthru
      _
    // Predicated region
    $region18: #{tpu_custom_call.1} parent=1 // pred_check
      _
    $region19: #{tpu_custom_call.1} parent=1 // pred_check_branch
      %49 = sbr.rel (0) target = $region21
    $region20: #{tpu_custom_call.1} parent=1 // pred_region
      %50 = dma.done [#allocation3], 16
    $region21: #{tpu_custom_call.1} parent=1 // pred_fallthru
      _
    %51 = vsyncpa [#allocation3], 1
    %52 = vsyncpa [#allocation4], 1

</llo_original>
